<compile_context>
chip_gen: v6e
topology: v6e:2x2x1
jax: 0.10.0
libtpu: 0.0.40
codegen_flags: <defaults>
</compile_context>

<pallas_src>
import math

import jax
import jax.numpy as jnp
import numpy as np
from jax.experimental import pallas as pl
from jax.experimental.pallas import tpu as pltpu


# ------------------------------ kernel helpers ------------------------------

_GELU_C = math.sqrt(2.0 / math.pi)


def _gelu_tanh(x):
    # nn.GELU(approximate='tanh'):  0.5*x*(1 + tanh(sqrt(2/pi)*(x + 0.044715*x^3)))
    return 0.5 * x * (1.0 + jnp.tanh(_GELU_C * (x + 0.044715 * x * x * x)))


# -------------------------------- the kernel --------------------------------

def _mlp_kernel(x_ref,        # (tm, C)   activations (row tile), f32 or bf16
                w_fc_ref,     # (C, tH)   bf16  (H-chunk of c_fc weight)
                b_fc_ref,     # (1, tH)   f32
                w_pr_ref,     # (tH, C)   bf16  (H-chunk of c_proj weight)
                b_pr_ref,     # (1, C)    f32   (grid-invariant)
                o_ref,        # (tm, C)   same dtype as x
                acc_ref):     # (tm, C)   f32 VMEM scratch (c_proj accumulator)
    h_idx = pl.program_id(1)

    @pl.when(h_idx == 0)
    def _():
        acc_ref[...] = jnp.zeros_like(acc_ref)

    # ---- c_fc chunk: full-C contraction, output columns [h*tH, (h+1)*tH) ----
    x = x_ref[...].astype(jnp.bfloat16)
    h = jnp.dot(x, w_fc_ref[...], preferred_element_type=jnp.float32)

    # ---- bias + GELU (tanh approx) in f32, pointwise in H so per-chunk OK ----
    h = _gelu_tanh(h + b_fc_ref[...])

    # ---- partial c_proj: accumulate this H-chunk's contribution in f32 ----
    acc_ref[...] += jnp.dot(h.astype(jnp.bfloat16), w_pr_ref[...],
                            preferred_element_type=jnp.float32)

    @pl.when(h_idx == pl.num_programs(1) - 1)
    def _():
        o_ref[...] = (acc_ref[...] + b_pr_ref[...]).astype(o_ref.dtype)


# --------------------------------- wrapper -----------------------------------

def _round_up(a, b):
    return ((a + b - 1) // b) * b


def _derive_vmem_limit():
    # Per-generation VMEM limit (v5e/v6e: 128 MiB, v7x: 64 MiB), with headroom.
    try:
        cap = int(pltpu.get_tpu_info().vmem_capacity_bytes)
    except Exception:
        cap = 64 * 1024 * 1024  # conservative fallback (v7x per-core VMEM)
    return int(cap * 0.8)


def _choose_hidden_tile(H, target):
    """Largest multiple of 128 <= target that divides H (falls back to H)."""
    tH = min(target, H)
    tH = max(128, (tH // 128) * 128)
    while H % tH != 0 and tH > 128:
        tH -= 128
    if H % tH != 0:
        tH = H
    return tH


def mlp_forward(x, params, *, block_rows=512, block_hidden=512):
    """x: (..., C) f32 or bf16.  params: dict (see _init_params).  Returns (..., C)."""
    orig_shape = x.shape
    C = orig_shape[-1]
    H = params["w_fc"].shape[1]

    xf = x.reshape(-1, C)
    N = xf.shape[0]

    # Row-tile: multiple of 8 sublanes, capped by row count; guarantee >= 2 row
    # tiles when possible so the "parallel" axis feeds both v7x TensorCores.
    tm = min(block_rows, _round_up(N, 8))
    tm = _round_up(tm, 8)
    if pl.cdiv(N, tm) < 2 and N > 8:
        tm = _round_up(pl.cdiv(N, 2), 8)
    num_row_tiles = pl.cdiv(N, tm)  # ragged last tile handled by Pallas masking

    # Hidden-dim chunk (reduction axis, innermost / "arbitrary").
    tH = _choose_hidden_tile(H, block_hidden)
    num_h_tiles = H // tH

    # Weights cast to bf16 once (half the VMEM/DMA, MXU-native); biases f32.
    w_fc = params["w_fc"].astype(jnp.bfloat16)
    w_pr = params["w_pr"].astype(jnp.bfloat16)
    b_fc = params["b_fc"].astype(jnp.float32)
    b_pr = params["b_pr"].astype(jnp.float32)

    out = pl.pallas_call(
        _mlp_kernel,
        out_shape=jax.ShapeDtypeStruct((N, C), x.dtype),
        grid=(num_row_tiles, num_h_tiles),
        in_specs=[
            # x row tile: block index invariant across h -> DMA'd once per row tile.
            pl.BlockSpec((tm, C), lambda i, h: (i, 0)),
            # weight / bias chunks stream along h (double-buffered -> DMA overlaps compute)
            pl.BlockSpec((C, tH), lambda i, h: (0, h)),
            pl.BlockSpec((1, tH), lambda i, h: (0, h)),
            pl.BlockSpec((tH, C), lambda i, h: (h, 0)),
            # c_proj bias is grid-invariant: single-buffer it.
            pl.BlockSpec((1, C), lambda i, h: (0, 0), pipeline_mode=pl.Buffered(1)),
        ],
        out_specs=pl.BlockSpec((tm, C), lambda i, h: (i, 0)),
        scratch_shapes=[pltpu.VMEM((tm, C), jnp.float32)],
        compiler_params=pltpu.CompilerParams(
            dimension_semantics=("parallel", "arbitrary"),
            vmem_limit_bytes=_derive_vmem_limit(),
        ),
    )(xf, w_fc, b_fc, w_pr, b_pr)

    return out.reshape(orig_shape)


# ------------------------ deterministic parameter init -----------------------

def _init_params(key, C):
    ks = jax.random.split(key, 3)
    s = 0.02
    H = 4 * C
    return {
        # (in, out) layout == transposed nn.Linear weight
        "w_fc": s * jax.random.normal(ks[0], (C, H), jnp.float32),
        "b_fc": s * jax.random.normal(ks[1], (1, H), jnp.float32),
        "w_pr": s * jax.random.normal(ks[2], (H, C), jnp.float32),
        "b_pr": jnp.zeros((1, C), jnp.float32),
    }


# ----------------------------- pure-JAX references ---------------------------

def _reference_f32(x, p):
    h = x.astype(jnp.float32) @ p["w_fc"] + p["b_fc"]
    h = _gelu_tanh(h)
    return h @ p["w_pr"] + p["b_pr"]


def _reference_bf16(x, p):
    # Same mixed-precision recipe as the kernel (bf16 matmul operands, f32 acc).
    h = jnp.dot(x.astype(jnp.bfloat16), p["w_fc"].astype(jnp.bfloat16),
                preferred_element_type=jnp.float32) + p["b_fc"]
    h = _gelu_tanh(h)
    return jnp.dot(h.astype(jnp.bfloat16), p["w_pr"].astype(jnp.bfloat16),
                   preferred_element_type=jnp.float32) + p["b_pr"]


# ------------------------------------ main ------------------------------------

if __name__ == "__main__":
    # Small but lane-dense test shape: C multiple of 128.  N = B*T = 16 rows
    # -> 2 row tiles (parallel axis) and, with block_hidden=256, 2 H-chunks so
    # the accumulator init/finalize path is exercised.
    B, T, C = 2, 8, 128
    key = jax.random.PRNGKey(0)
    kx, kp = jax.random.split(key)
    x = jax.random.normal(kx, (B, T, C), jnp.float32)
    params = _init_params(kp, C)

    out = mlp_forward(x, params, block_hidden=256)
    out = jax.block_until_ready(out)
    assert out.shape == (B, T, C) and out.dtype == x.dtype

    ref_bf16 = jax.block_until_ready(_reference_bf16(x, params))
    ref_f32 = jax.block_until_ready(_reference_f32(x, params))

    # Tight check against a reference using the same mixed precision...
    np.testing.assert_allclose(np.asarray(out), np.asarray(ref_bf16),
                               atol=1e-4, rtol=1e-4)
    # ...and a looser check against the full-f32 PyTorch-equivalent math.
    np.testing.assert_allclose(np.asarray(out), np.asarray(ref_f32),
                               atol=2e-2, rtol=2e-2)

    # Dtype-polymorphic path: bf16 activations in / bf16 out (f32 accumulation
    # inside the kernel stays unchanged).
    out_bf16 = jax.block_until_ready(mlp_forward(x.astype(jnp.bfloat16), params,
                                                 block_hidden=256))
    assert out_bf16.dtype == jnp.bfloat16 and out_bf16.shape == (B, T, C)
    np.testing.assert_allclose(np.asarray(out_bf16, dtype=np.float32),
                               np.asarray(ref_f32), atol=5e-2, rtol=5e-2)

    print("KERNEL_OK")
</pallas_src>

<mosaic_0001>
module attributes {stable_mosaic.version = 11 : i64} {
  func.func @_mlp_kernel(%arg0: i32, %arg1: i32, %arg2: memref<8x128xf32, #tpu.memory_space<vmem>>, %arg3: memref<128x256xbf16, #tpu.memory_space<vmem>>, %arg4: memref<1x256xf32, #tpu.memory_space<vmem>>, %arg5: memref<256x128xbf16, #tpu.memory_space<vmem>>, %arg6: memref<1x128xf32, #tpu.memory_space<vmem>>, %arg7: memref<8x128xf32, #tpu.memory_space<vmem>>, %arg8: memref<8x128xf32, #tpu.memory_space<vmem>>) attributes {dimension_semantics = [#tpu.dimension_semantics<parallel>, #tpu.dimension_semantics<arbitrary>], iteration_bounds = array<i64: 2, 2>, scalar_prefetch = 0 : i64, scratch_operands = 1 : i64, tpu.core_type = #tpu.core_type<tc>, window_params = [{transform_indices = @transform_0, window_bounds = array<i64: 8, 128>}, {transform_indices = @transform_1, window_bounds = array<i64: 128, 256>}, {transform_indices = @transform_2, window_bounds = array<i64: 1, 256>}, {transform_indices = @transform_3, window_bounds = array<i64: 256, 128>}, {pipeline_mode = #tpu.pipeline_mode<synchronous>, transform_indices = @transform_4, window_bounds = array<i64: 1, 128>}, {transform_indices = @transform_5, window_bounds = array<i64: 8, 128>}]} {
    %c0_i32 = arith.constant 0 : i32
    %0 = arith.cmpi eq, %arg1, %c0_i32 : i32
    %1 = arith.extui %0 : i1 to i32
    %c0_i32_0 = arith.constant 0 : i32
    %2 = arith.cmpi ne, %1, %c0_i32_0 : i32
    scf.if %2 {
      %cst_18 = arith.constant 0.000000e+00 : f32
      %32 = vector.broadcast %cst_18 : f32 to vector<8x128xf32>
      %c0_19 = arith.constant 0 : index
      %c0_20 = arith.constant 0 : index
      %33 = vector.load %arg8[%c0_19, %c0_20] : memref<8x128xf32, #tpu.memory_space<vmem>>, vector<8x128xf32>
      tpu.vector_store %arg8[%c0_19, %c0_20], %32 {strides = array<i32>} : memref<8x128xf32, #tpu.memory_space<vmem>>, vector<8x128xf32>,
    } else {
    }
    %c0 = arith.constant 0 : index
    %c0_1 = arith.constant 0 : index
    %3 = vector.load %arg2[%c0, %c0_1] : memref<8x128xf32, #tpu.memory_space<vmem>>, vector<8x128xf32>
    %4 = arith.truncf %3 : vector<8x128xf32> to vector<8x128xbf16>
    %c0_2 = arith.constant 0 : index
    %c0_3 = arith.constant 0 : index
    %5 = vector.load %arg3[%c0_2, %c0_3] : memref<128x256xbf16, #tpu.memory_space<vmem>>, vector<128x256xbf16>
    %cst = arith.constant dense<0.000000e+00> : vector<8x256xf32>
    %6 = tpu.matmul %4, %5, %cst {dimension_numbers = #tpu.dot_dimension_numbers<[1], [0], [0], [1], [0, 0, 1, 1], [], []>} : vector<8x128xbf16>, vector<128x256xbf16>, vector<8x256xf32> -> vector<8x256xf32>
    %c0_4 = arith.constant 0 : index
    %c0_5 = arith.constant 0 : index
    %7 = vector.load %arg4[%c0_4, %c0_5] : memref<1x256xf32, #tpu.memory_space<vmem>>, vector<1x256xf32>
    %8 = vector.broadcast %7 : vector<1x256xf32> to vector<8x256xf32>
    %9 = arith.addf %6, %8 : vector<8x256xf32>
    %cst_6 = arith.constant 5.000000e-01 : f32
    %10 = vector.broadcast %cst_6 : f32 to vector<8x256xf32>
    %11 = arith.mulf %10, %9 : vector<8x256xf32>
    %cst_7 = arith.constant 4.471500e-02 : f32
    %12 = vector.broadcast %cst_7 : f32 to vector<8x256xf32>
    %13 = arith.mulf %12, %9 : vector<8x256xf32>
    %14 = arith.mulf %13, %9 : vector<8x256xf32>
    %15 = arith.mulf %14, %9 : vector<8x256xf32>
    %16 = arith.addf %9, %15 : vector<8x256xf32>
    %cst_8 = arith.constant 0.797884583 : f32
    %17 = vector.broadcast %cst_8 : f32 to vector<8x256xf32>
    %18 = arith.mulf %17, %16 : vector<8x256xf32>
    %19 = math.tanh %18 : vector<8x256xf32>
    %cst_9 = arith.constant 1.000000e+00 : f32
    %20 = vector.broadcast %cst_9 : f32 to vector<8x256xf32>
    %21 = arith.addf %20, %19 : vector<8x256xf32>
    %22 = arith.mulf %11, %21 : vector<8x256xf32>
    %c0_10 = arith.constant 0 : index
    %c0_11 = arith.constant 0 : index
    %23 = vector.load %arg8[%c0_10, %c0_11] : memref<8x128xf32, #tpu.memory_space<vmem>>, vector<8x128xf32>
    %24 = arith.truncf %22 : vector<8x256xf32> to vector<8x256xbf16>
    %c0_12 = arith.constant 0 : index
    %c0_13 = arith.constant 0 : index
    %25 = vector.load %arg5[%c0_12, %c0_13] : memref<256x128xbf16, #tpu.memory_space<vmem>>, vector<256x128xbf16>
    %cst_14 = arith.constant dense<0.000000e+00> : vector<8x128xf32>
    %26 = tpu.matmul %24, %25, %cst_14 {dimension_numbers = #tpu.dot_dimension_numbers<[1], [0], [0], [1], [0, 0, 1, 1], [], []>} : vector<8x256xbf16>, vector<256x128xbf16>, vector<8x128xf32> -> vector<8x128xf32>
    %27 = arith.addf %23, %26 : vector<8x128xf32>
    %c0_15 = arith.constant 0 : index
    %c0_16 = arith.constant 0 : index
    %28 = vector.load %arg8[%c0_15, %c0_16] : memref<8x128xf32, #tpu.memory_space<vmem>>, vector<8x128xf32>
    tpu.vector_store %arg8[%c0_15, %c0_16], %27 {strides = array<i32>} : memref<8x128xf32, #tpu.memory_space<vmem>>, vector<8x128xf32>,
    %c1_i32 = arith.constant 1 : i32
    %29 = arith.cmpi eq, %arg1, %c1_i32 : i32
    %30 = arith.extui %29 : i1 to i32
    %c0_i32_17 = arith.constant 0 : i32
    %31 = arith.cmpi ne, %30, %c0_i32_17 : i32
    scf.if %31 {
      %c0_18 = arith.constant 0 : index
      %c0_19 = arith.constant 0 : index
      %32 = vector.load %arg8[%c0_18, %c0_19] : memref<8x128xf32, #tpu.memory_space<vmem>>, vector<8x128xf32>
      %c0_20 = arith.constant 0 : index
      %c0_21 = arith.constant 0 : index
      %33 = vector.load %arg6[%c0_20, %c0_21] : memref<1x128xf32, #tpu.memory_space<vmem>>, vector<1x128xf32>
      %34 = vector.broadcast %33 : vector<1x128xf32> to vector<8x128xf32>
      %35 = arith.addf %32, %34 : vector<8x128xf32>
      %c0_22 = arith.constant 0 : index
      %c0_23 = arith.constant 0 : index
      %36 = vector.load %arg7[%c0_22, %c0_23] : memref<8x128xf32, #tpu.memory_space<vmem>>, vector<8x128xf32>
      tpu.vector_store %arg7[%c0_22, %c0_23], %35 {strides = array<i32>} : memref<8x128xf32, #tpu.memory_space<vmem>>, vector<8x128xf32>,
    } else {
    }
    return
  }
  func.func @transform_0(%arg0: i32, %arg1: i32) -> (i32, i32) {
    %c0_i32 = arith.constant 0 : i32
    %c0_i32_0 = arith.constant 0 : i32
    return %arg0, %c0_i32 : i32, i32
  }
  func.func @transform_1(%arg0: i32, %arg1: i32) -> (i32, i32) {
    %c0_i32 = arith.constant 0 : i32
    %c0_i32_0 = arith.constant 0 : i32
    return %c0_i32, %arg1 : i32, i32
  }
  func.func @transform_2(%arg0: i32, %arg1: i32) -> (i32, i32) {
    %c0_i32 = arith.constant 0 : i32
    %c0_i32_0 = arith.constant 0 : i32
    return %c0_i32, %arg1 : i32, i32
  }
  func.func @transform_3(%arg0: i32, %arg1: i32) -> (i32, i32) {
    %c0_i32 = arith.constant 0 : i32
    %c0_i32_0 = arith.constant 0 : i32
    return %arg1, %c0_i32 : i32, i32
  }
  func.func @transform_4(%arg0: i32, %arg1: i32) -> (i32, i32) {
    %c0_i32 = arith.constant 0 : i32
    %c0_i32_0 = arith.constant 0 : i32
    %c0_i32_1 = arith.constant 0 : i32
    return %c0_i32, %c0_i32_0 : i32, i32
  }
  func.func @transform_5(%arg0: i32, %arg1: i32) -> (i32, i32) {
    %c0_i32 = arith.constant 0 : i32
    %c0_i32_0 = arith.constant 0 : i32
    return %arg0, %c0_i32 : i32, i32
  }
}

</mosaic_0001>

<llo_original>
// kernel: tpu_custom_call.1
$region0: #{tpu_custom_call.1}
  #allocation0 [shape = 'u32[]', space=smem, size = 0x4, offset = 0x4, fixed_abs, tag = 'smem constant byte address 0x4 - core index']
  #allocation1 [shape = 'u32[144,128]{1,0:T(1,128)}', space=vmem, size = 0x12000, scoped, tag = 'internal scratch']
  #allocation2 [shape = 'f32[8,128]{1,0:T(8,128)}', space=vmem, size = 0x1000, scoped, tag = 'scratch operand']
  %s0 = inlined_call_operand.hbm [shape: f32[16,128], index: 0, kind: input, shape index: {}]
  %s1 = inlined_call_operand.hbm [shape: bf16[128,512], index: 1, kind: input, shape index: {}]
  %s2 = inlined_call_operand.hbm [shape: f32[1,512], index: 2, kind: input, shape index: {}]
  %s3 = inlined_call_operand.hbm [shape: bf16[512,128], index: 3, kind: input, shape index: {}]
  %s4 = inlined_call_operand.vmem [shape: f32[1,128], index: 4, kind: input, shape index: {}]
  %s5 = inlined_call_operand.hbm [shape: f32[16,128], index: 5, kind: output, shape index: {}]
  %s6 = sld [smem:[#allocation0]]
  $region77: #{tpu_custom_call.1} parent=0
    _
  %s8 = ssub.s32 1, %s6
  %s9 = scalar_select 0, %s8, %s6
  $region1: #{tpu_custom_call.1} parent=0
    #allocation3 [shape = 'u8[8192]{0}', space=vmem, size = 0x2000, scoped, tag = 'input window, operand 0']
    #allocation4 [shape = 's32[2]{0}', space=sflag, size = 0x8, scoped, tag = 'scoped memory for tpu_custom_call.1']
    #allocation5 [shape = 's32[2]{0}', space=sflag, size = 0x8, scoped, tag = 'scoped memory for tpu_custom_call.1']
    #allocation6 [shape = 'u8[131072]{0}', space=vmem, size = 0x20000, scoped, tag = 'input window, operand 1']
    #allocation7 [shape = 's32[2]{0}', space=sflag, size = 0x8, scoped, tag = 'scoped memory for tpu_custom_call.1']
    #allocation8 [shape = 'u8[2048]{0}', space=vmem, size = 0x800, scoped, tag = 'input window, operand 2']
    #allocation9 [shape = 'u8[131072]{0}', space=vmem, size = 0x20000, scoped, tag = 'input window, operand 3']
    #allocation10 [shape = 's32[2]{0}', space=sflag, size = 0x8, scoped, tag = 'scoped memory for tpu_custom_call.1']
    #allocation11 [shape = 'u8[8192]{0}', space=vmem, size = 0x2000, scoped, tag = 'output window, operand 0']
    %10 = vsyncpa [#allocation4], 0
    %s11 = scalar_lea.sflag [#allocation4], 1
    %12 = vsyncpa %s11, 0
    %13 = vsyncpa [#allocation7], 0
    %s14 = scalar_lea.sflag [#allocation7], 1
    %15 = vsyncpa %s14, 0
    %16 = vsyncpa [#allocation10], 0
    %s17 = scalar_lea.sflag [#allocation10], 1
    %18 = vsyncpa %s17, 0
    %19 = vsyncpa [#allocation5], 0
    %s20 = scalar_lea.sflag [#allocation5], 1
    %21 = vsyncpa %s20, 0
    loop: start=0, step=1, limit=6
    $region2: #{tpu_custom_call.1} parent=1 // loop_pre_header
      _
    $region3: #{tpu_custom_call.1} parent=1 // loop_header
      %s23 = sphi 0, %s27
      %p24 = scmp.ge.s32.totalorder %s23, 6
      %s30 = sphi 0, %s42
      %s31 = sphi 0, %s38
      %s32 = sphi 0, %s30
      %s33 = sphi 0, %s31
      %s34 = sphi 0, %s32
      %s35 = sphi 0, %s33
      %s45 = sphi 0, %s47
      %s48 = sphi 0, %s45
      %s49 = sphi 0, %s48
      %s65 = sphi 0, %s49
      %s71 = sphi 0, %s73
      %s74 = sphi 0, %s71
      %s75 = sphi 0, %s74
      %s91 = sphi 0, %s75
      %s97 = sphi 0, %s99
      %s100 = sphi 0, %s97
      %s101 = sphi 0, %s100
      %s117 = sphi 0, %s101
      %s123 = sphi 0, %s125
      %s126 = sphi 0, %s123
      %s127 = sphi 0, %s126
      %s143 = sphi 0, %s127
      %s147 = sphi 0, %s147
      %s149 = sphi 0, %s147
      %s150 = sphi 0, %s149
      %s164 = sphi 0, %s150
      %s170 = sphi 0, %s172
      %s173 = sphi 0, %s170
      %s174 = sphi 0, %s173
      %s190 = sphi 0, %s174
    $region4: #{tpu_custom_call.1} parent=1 // loop_header_branch
      %26 = sbr.rel (%p24) target = $region8
    $region5: #{tpu_custom_call.1} parent=1 // loop_body
      %s28 = ssub.s32 %s23, 1
      %s29 = ssub.s32 %s23, 2
      %s36 = sadd.s32 1, %s31
      %p37 = scmp.ge.s32.totalorder %s36, 2
      %s38 = scalar_select %p37, 0, %s36
      %s39 = sadd.s32 1, %s30
      %s40 = scalar_select %p37, %s39, %s30
      %p41 = scmp.ge.s32.totalorder %s40, 2
      %s42 = scalar_select %p41, 0, %s40
      %s43 = ssub.s32 %s30, %s42
      %p44 = scmp.eq.s32.totalorder %s43, 0
      %s46 = sadd.s32 %s45, 1
      %s47 = scalar_select %p44, %s45, %s46
      %p50 = pneg %p44
      %p51 = scmp.eq.s32.totalorder %s23, 3
      %p52 = por %p50, %p51
      %p53 = scmp.ne.s32.totalorder %s45, %s48
      %p54 = scmp.eq.s32.totalorder %s23, 0
      %p55 = por %p53, %p54
      %p56 = scmp.ne.s32.totalorder %s45, %s48
      %p57 = scmp.eq.s32.totalorder %s28, 3
      %p58 = por %p56, %p57
      %p59 = scmp.ne.s32.totalorder %s48, %s49
      %p60 = scmp.eq.s32.totalorder %s28, 0
      %p61 = por %p59, %p60
      %p62 = scmp.ne.s32.totalorder %s48, %s49
      %p63 = scmp.eq.s32.totalorder %s29, 3
      %p64 = por %p62, %p63
      %p66 = scmp.ne.s32.totalorder %s49, %s65
      %p67 = scmp.eq.s32.totalorder %s29, 0
      %p68 = por %p66, %p67
      %s69 = ssub.s32 %s31, %s38
      %p70 = scmp.eq.s32.totalorder %s69, 0
      %s72 = sadd.s32 %s71, 1
      %s73 = scalar_select %p70, %s71, %s72
      %p76 = pneg %p70
      %p77 = scmp.eq.s32.totalorder %s23, 3
      %p78 = por %p76, %p77
      %p79 = scmp.ne.s32.totalorder %s71, %s74
      %p80 = scmp.eq.s32.totalorder %s23, 0
      %p81 = por %p79, %p80
      %p82 = scmp.ne.s32.totalorder %s71, %s74
      %p83 = scmp.eq.s32.totalorder %s28, 3
      %p84 = por %p82, %p83
      %p85 = scmp.ne.s32.totalorder %s74, %s75
      %p86 = scmp.eq.s32.totalorder %s28, 0
      %p87 = por %p85, %p86
      %p88 = scmp.ne.s32.totalorder %s74, %s75
      %p89 = scmp.eq.s32.totalorder %s29, 3
      %p90 = por %p88, %p89
      %p92 = scmp.ne.s32.totalorder %s75, %s91
      %p93 = scmp.eq.s32.totalorder %s29, 0
      %p94 = por %p92, %p93
      %s95 = ssub.s32 %s31, %s38
      %p96 = scmp.eq.s32.totalorder %s95, 0
      %s98 = sadd.s32 %s97, 1
      %s99 = scalar_select %p96, %s97, %s98
      %p102 = pneg %p96
      %p103 = scmp.eq.s32.totalorder %s23, 3
      %p104 = por %p102, %p103
      %p105 = scmp.ne.s32.totalorder %s97, %s100
      %p106 = scmp.eq.s32.totalorder %s23, 0
      %p107 = por %p105, %p106
      %p108 = scmp.ne.s32.totalorder %s97, %s100
      %p109 = scmp.eq.s32.totalorder %s28, 3
      %p110 = por %p108, %p109
      %p111 = scmp.ne.s32.totalorder %s100, %s101
      %p112 = scmp.eq.s32.totalorder %s28, 0
      %p113 = por %p111, %p112
      %p114 = scmp.ne.s32.totalorder %s100, %s101
      %p115 = scmp.eq.s32.totalorder %s29, 3
      %p116 = por %p114, %p115
      %p118 = scmp.ne.s32.totalorder %s101, %s117
      %p119 = scmp.eq.s32.totalorder %s29, 0
      %p120 = por %p118, %p119
      %s121 = ssub.s32 %s31, %s38
      %p122 = scmp.eq.s32.totalorder %s121, 0
      %s124 = sadd.s32 %s123, 1
      %s125 = scalar_select %p122, %s123, %s124
      %p128 = pneg %p122
      %p129 = scmp.eq.s32.totalorder %s23, 3
      %p130 = por %p128, %p129
      %p131 = scmp.ne.s32.totalorder %s123, %s126
      %p132 = scmp.eq.s32.totalorder %s23, 0
      %p133 = por %p131, %p132
      %p134 = scmp.ne.s32.totalorder %s123, %s126
      %p135 = scmp.eq.s32.totalorder %s28, 3
      %p136 = por %p134, %p135
      %p137 = scmp.ne.s32.totalorder %s126, %s127
      %p138 = scmp.eq.s32.totalorder %s28, 0
      %p139 = por %p137, %p138
      %p140 = scmp.ne.s32.totalorder %s126, %s127
      %p141 = scmp.eq.s32.totalorder %s29, 3
      %p142 = por %p140, %p141
      %p144 = scmp.ne.s32.totalorder %s127, %s143
      %p145 = scmp.eq.s32.totalorder %s29, 0
      %p146 = por %p144, %p145
      %s148 = sadd.s32 %s147, 1
      %p151 = scmp.eq.s32.totalorder %s23, 3
      %p152 = scmp.ne.s32.totalorder %s147, %s149
      %p153 = scmp.eq.s32.totalorder %s23, 0
      %p154 = por %p152, %p153
      %p155 = scmp.ne.s32.totalorder %s147, %s149
      %p156 = scmp.eq.s32.totalorder %s28, 3
      %p157 = por %p155, %p156
      %p158 = scmp.ne.s32.totalorder %s149, %s150
      %p159 = scmp.eq.s32.totalorder %s28, 0
      %p160 = por %p158, %p159
      %p161 = scmp.ne.s32.totalorder %s149, %s150
      %p162 = scmp.eq.s32.totalorder %s29, 3
      %p163 = por %p161, %p162
      %p165 = scmp.ne.s32.totalorder %s150, %s164
      %p166 = scmp.eq.s32.totalorder %s29, 0
      %p167 = por %p165, %p166
      %s168 = ssub.s32 %s30, %s42
      %p169 = scmp.eq.s32.totalorder %s168, 0
      %s171 = sadd.s32 %s170, 1
      %s172 = scalar_select %p169, %s170, %s171
      %p175 = pneg %p169
      %p176 = scmp.eq.s32.totalorder %s23, 3
      %p177 = por %p175, %p176
      %p178 = scmp.ne.s32.totalorder %s170, %s173
      %p179 = scmp.eq.s32.totalorder %s23, 0
      %p180 = por %p178, %p179
      %p181 = scmp.ne.s32.totalorder %s170, %s173
      %p182 = scmp.eq.s32.totalorder %s28, 3
      %p183 = por %p181, %p182
      %p184 = scmp.ne.s32.totalorder %s173, %s174
      %p185 = scmp.eq.s32.totalorder %s28, 0
      %p186 = por %p184, %p185
      %p187 = scmp.ne.s32.totalorder %s173, %s174
      %p188 = scmp.eq.s32.totalorder %s29, 3
      %p189 = por %p187, %p188
      %p191 = scmp.ne.s32.totalorder %s174, %s190
      %p192 = scmp.eq.s32.totalorder %s29, 0
      %p193 = por %p191, %p192
      %p194 = scmp.le.s32.totalorder 1, %s23
      %p195 = scmp.lt.s32.totalorder %s23, 5
      %p196 = pnand %p194, %p195
      %p197 = pneg %p196
      // Predicated region
      $region9: #{tpu_custom_call.1} parent=5 // pred_check
        _
      $region10: #{tpu_custom_call.1} parent=5 // pred_check_branch
        %199 = sbr.rel (%p196) target = $region12
      $region11: #{tpu_custom_call.1} parent=5 // pred_region
        %s200 = ssub.s32 %s23, 1
        // Predicated region
        $region13: #{tpu_custom_call.1} parent=11 // pred_check
          %p201 = pneg %p160
        $region14: #{tpu_custom_call.1} parent=11 // pred_check_branch
          %203 = sbr.rel (%p201) target = $region16
        $region15: #{tpu_custom_call.1} parent=11 // pred_region
          _
        $region16: #{tpu_custom_call.1} parent=11 // pred_fallthru
          _
      $region12: #{tpu_custom_call.1} parent=5 // pred_fallthru
        _
      %p204 = scmp.lt.s32.totalorder %s23, 4
      // Predicated region
      $region17: #{tpu_custom_call.1} parent=5 // pred_check
        %p205 = pneg %p204
      $region18: #{tpu_custom_call.1} parent=5 // pred_check_branch
        %207 = sbr.rel (%p205) target = $region20
      $region19: #{tpu_custom_call.1} parent=5 // pred_region
        // Predicated region
        $region21: #{tpu_custom_call.1} parent=19 // pred_check
          %p208 = pneg %p55
        $region22: #{tpu_custom_call.1} parent=19 // pred_check_branch
          %210 = sbr.rel (%p208) target = $region24
        $region23: #{tpu_custom_call.1} parent=19 // pred_region
          %s211 = sand.u32 %s45, 1
          %s212 = scalar_lea.sflag [#allocation4], %s211
          %s213 = sand.u32 %s45, 1
          %s214 = smul.addr %s213, 8
          %s215 = scalar_lea.vmem [#allocation3], %s214
          %s217 = ssub.s32 128, 128
          %218 = vsyncadd %s212, %s217
          %s219 = smul.addr %s30, 128
          %s220 = scalar_lea.hbm %s0, %s219
          %s222 = sshll.u32 %s215, 4
          %s223 = int_to_ptr.vmem [resolvable:$true] %s222
          %225 = dma.hbm_to_vmem [thread:$0]  %s220, 128, %s223, %s212
        $region24: #{tpu_custom_call.1} parent=19 // pred_fallthru
          _
        // Predicated region
        $region25: #{tpu_custom_call.1} parent=19 // pred_check
          %p226 = pneg %p81
        $region26: #{tpu_custom_call.1} parent=19 // pred_check_branch
          %228 = sbr.rel (%p226) target = $region28
        $region27: #{tpu_custom_call.1} parent=19 // pred_region
          %s229 = sand.u32 %s23, 1
          %s230 = scalar_lea.sflag [#allocation7], %s229
          %s231 = sand.u32 %s71, 1
          %s232 = smul.addr %s231, 128
          %s233 = scalar_lea.vmem [#allocation6], %s232
          %s234 = smul.u32 2, %s31
          %s236 = ssub.s32 2048, 2048
          %237 = vsyncadd %s230, %s236
          %s238 = smul.addr %s234, 64
          %s239 = scalar_lea.hbm %s1, %s238
          %s240 = sshll.u32 %s233, 4
          %s241 = int_to_ptr.vmem [resolvable:$true] %s240
          %246 = dma.hbm_to_vmem [thread:$0]  %s239, 2048, %s241, %s230, 256, 128, 8
        $region28: #{tpu_custom_call.1} parent=19 // pred_fallthru
          _
        // Predicated region
        $region29: #{tpu_custom_call.1} parent=19 // pred_check
          %p247 = pneg %p107
        $region30: #{tpu_custom_call.1} parent=19 // pred_check_branch
          %249 = sbr.rel (%p247) target = $region32
        $region31: #{tpu_custom_call.1} parent=19 // pred_region
          %s250 = sand.u32 %s23, 1
          %s251 = scalar_lea.sflag [#allocation7], %s250
          %s252 = sand.u32 %s97, 1
          %s253 = smul.addr %s252, 2
          %s254 = scalar_lea.vmem [#allocation8], %s253
          %s255 = smul.u32 2, %s31
          %s257 = ssub.s32 32, 32
          %258 = vsyncadd %s251, %s257
          %s259 = smul.addr %s255, 16
          %s260 = scalar_lea.hbm %s2, %s259
          %s262 = sshll.u32 %s254, 4
          %s263 = int_to_ptr.vmem [resolvable:$true] %s262
          %265 = dma.hbm_to_vmem [thread:$0]  %s260, 32, %s263, %s251
        $region32: #{tpu_custom_call.1} parent=19 // pred_fallthru
          _
        // Predicated region
        $region33: #{tpu_custom_call.1} parent=19 // pred_check
          %p266 = pneg %p133
        $region34: #{tpu_custom_call.1} parent=19 // pred_check_branch
          %268 = sbr.rel (%p266) target = $region36
        $region35: #{tpu_custom_call.1} parent=19 // pred_region
          %s269 = sand.u32 %s123, 1
          %s270 = scalar_lea.sflag [#allocation10], %s269
          %s271 = sand.u32 %s123, 1
          %s272 = smul.addr %s271, 128
          %s273 = scalar_lea.vmem [#allocation9], %s272
          %s274 = smul.u32 32, %s31
          %s276 = ssub.s32 2048, 2048
          %277 = vsyncadd %s270, %s276
          %s278 = smul.addr %s274, 64
          %s279 = scalar_lea.hbm %s3, %s278
          %s280 = sshll.u32 %s273, 4
          %s281 = int_to_ptr.vmem [resolvable:$true] %s280
          %286 = dma.hbm_to_vmem [thread:$0]  %s279, 2048, %s281, %s270, 64, 64, 4
        $region36: #{tpu_custom_call.1} parent=19 // pred_fallthru
          _
      $region20: #{tpu_custom_call.1} parent=5 // pred_fallthru
        _
      %p287 = scmp.le.s32.totalorder 1, %s23
      %p288 = scmp.lt.s32.totalorder %s23, 5
      %p289 = pnand %p287, %p288
      %p290 = pneg %p289
      // Predicated region
      $region37: #{tpu_custom_call.1} parent=5 // pred_check
        _
      $region38: #{tpu_custom_call.1} parent=5 // pred_check_branch
        %292 = sbr.rel (%p289) target = $region40
      $region39: #{tpu_custom_call.1} parent=5 // pred_region
        %s293 = ssub.s32 %s23, 1
        %s294 = sand.u32 %s48, 1
        %s295 = scalar_lea.sflag [#allocation4], %s294
        %s296 = sand.u32 %s48, 1
        %s297 = smul.addr %s296, 8
        %s298 = scalar_lea.vmem [#allocation3], %s297
        // Predicated region
        $region41: #{tpu_custom_call.1} parent=39 // pred_check
          %p299 = pneg %p61
        $region42: #{tpu_custom_call.1} parent=39 // pred_check_branch
          %301 = sbr.rel (%p299) target = $region44
        $region43: #{tpu_custom_call.1} parent=39 // pred_region
          %302 = dma.done %s295, 128
        $region44: #{tpu_custom_call.1} parent=39 // pred_fallthru
          _
        %s303 = sand.u32 %s28, 1
        %s304 = scalar_lea.sflag [#allocation7], %s303
        %s305 = sand.u32 %s74, 1
        %s306 = smul.addr %s305, 128
        %s307 = scalar_lea.vmem [#allocation6], %s306
        // Predicated region
        $region45: #{tpu_custom_call.1} parent=39 // pred_check
          %p308 = pneg %p87
        $region46: #{tpu_custom_call.1} parent=39 // pred_check_branch
          %310 = sbr.rel (%p308) target = $region48
        $region47: #{tpu_custom_call.1} parent=39 // pred_region
          %311 = dma.done %s304, 2048
        $region48: #{tpu_custom_call.1} parent=39 // pred_fallthru
          _
        %s312 = sand.u32 %s28, 1
        %s313 = scalar_lea.sflag [#allocation7], %s312
        %s314 = sand.u32 %s100, 1
        %s315 = smul.addr %s314, 2
        %s316 = scalar_lea.vmem [#allocation8], %s315
        // Predicated region
        $region49: #{tpu_custom_call.1} parent=39 // pred_check
          %p317 = pneg %p113
        $region50: #{tpu_custom_call.1} parent=39 // pred_check_branch
          %319 = sbr.rel (%p317) target = $region52
        $region51: #{tpu_custom_call.1} parent=39 // pred_region
          %320 = dma.done %s313, 32
        $region52: #{tpu_custom_call.1} parent=39 // pred_fallthru
          _
        %s321 = sand.u32 %s126, 1
        %s322 = scalar_lea.sflag [#allocation10], %s321
        %s323 = sand.u32 %s126, 1
        %s324 = smul.addr %s323, 128
        %s325 = scalar_lea.vmem [#allocation9], %s324
        // Predicated region
        $region53: #{tpu_custom_call.1} parent=39 // pred_check
          %p326 = pneg %p139
        $region54: #{tpu_custom_call.1} parent=39 // pred_check_branch
          %328 = sbr.rel (%p326) target = $region56
        $region55: #{tpu_custom_call.1} parent=39 // pred_region
          %329 = dma.done %s322, 2048
        $region56: #{tpu_custom_call.1} parent=39 // pred_fallthru
          _
        %s330 = sand.u32 %s48, 1
        %s331 = scalar_lea.sflag [#allocation4], %s330
        %s332 = sand.u32 %s48, 1
        %s333 = smul.addr %s332, 8
        %s334 = scalar_lea.vmem [#allocation3], %s333
        %p335 = pneg %p61
        %p336 = pneg %p58
        %s337 = sand.u32 %s28, 1
        %s338 = scalar_lea.sflag [#allocation7], %s337
        %s339 = sand.u32 %s74, 1
        %s340 = smul.addr %s339, 128
        %s341 = scalar_lea.vmem [#allocation6], %s340
        %p342 = pneg %p87
        %p343 = pneg %p84
        %s344 = sand.u32 %s28, 1
        %s345 = scalar_lea.sflag [#allocation7], %s344
        %s346 = sand.u32 %s100, 1
        %s347 = smul.addr %s346, 2
        %s348 = scalar_lea.vmem [#allocation8], %s347
        %p349 = pneg %p113
        %p350 = pneg %p110
        %s351 = sand.u32 %s126, 1
        %s352 = scalar_lea.sflag [#allocation10], %s351
        %s353 = sand.u32 %s126, 1
        %s354 = smul.addr %s353, 128
        %s355 = scalar_lea.vmem [#allocation9], %s354
        %p356 = pneg %p139
        %p357 = pneg %p136
        %p358 = pneg %p160
        %p359 = pneg %p157
        %p360 = pneg %p186
        %p361 = pneg %p183
        %s362 = sand.u32 %s173, 1
        %s363 = scalar_lea.sflag [#allocation5], %s362
        %s364 = sand.u32 %s173, 1
        %s365 = smul.addr %s364, 8
        %s366 = scalar_lea.vmem [#allocation11], %s365
        %s367 = smul.u32 2, %s33
        %s368 = smul.u32 2, %s33
        %s369 = smul.u32 32, %s33
        %p371 = scmp.eq.s32.totalorder %s33, 0
        // Predicated region
        $region57: #{tpu_custom_call.1} parent=39 // pred_check
          %p372 = pneg %p371
        $region58: #{tpu_custom_call.1} parent=39 // pred_check_branch
          %374 = sbr.rel (%p372) target = $region60
        $region59: #{tpu_custom_call.1} parent=39 // pred_region
          %375 = vst [vmem:[#allocation2] sm:$0xff] 0.0
        $region60: #{tpu_custom_call.1} parent=39 // pred_fallthru
          _
        %v376 = vld [vmem:[%s298] sm:$0xff]
        %v377 = vpack.c.bf16 %v376, %v376
        %v378 = vld [vmem:[%s307] sm:$0xff]
        %v379 = vld [vmem:[%s307 + $0x8] sm:$0xff]
        %v380 = vld [vmem:[%s307 + $0x10] sm:$0xff]
        %v381 = vld [vmem:[%s307 + $0x18] sm:$0xff]
        %v382 = vld [vmem:[%s307 + $0x20] sm:$0xff]
        %v383 = vld [vmem:[%s307 + $0x28] sm:$0xff]
        %v384 = vld [vmem:[%s307 + $0x30] sm:$0xff]
        %v385 = vld [vmem:[%s307 + $0x38] sm:$0xff]
        %v386 = vld [vmem:[%s307 + $0x40] sm:$0xff]
        %v387 = vld [vmem:[%s307 + $0x48] sm:$0xff]
        %v388 = vld [vmem:[%s307 + $0x50] sm:$0xff]
        %v389 = vld [vmem:[%s307 + $0x58] sm:$0xff]
        %v390 = vld [vmem:[%s307 + $0x60] sm:$0xff]
        %v391 = vld [vmem:[%s307 + $0x68] sm:$0xff]
        %v392 = vld [vmem:[%s307 + $0x70] sm:$0xff]
        %v393 = vld [vmem:[%s307 + $0x78] sm:$0xff]
        %v394 = vld [vmem:[%s316] sm:$0x3]
        %v396 = vlaneseq
        %v397 = vshrl.u32 %v396, 7
        %v398 = vsub.s32 0, %v397
        %v399 = vrot.slane %v394, %v398
        %v400 = vlaneseq
        %v401 = vshrl.u32 %v400, 7
        %v402 = vsub.s32 1, %v401
        %v403 = vrot.slane %v394, %v402
        %v422 = vunpack.c.l.b16 %v378
        %v423 = vunpack.c.h.b16 %v378
        %v424 = vunpack.c.l.b16 %v379
        %v425 = vunpack.c.h.b16 %v379
        %v426 = vunpack.c.l.b16 %v380
        %v427 = vunpack.c.h.b16 %v380
        %v428 = vunpack.c.l.b16 %v381
        %v429 = vunpack.c.h.b16 %v381
        %v430 = vunpack.c.l.b16 %v382
        %v431 = vunpack.c.h.b16 %v382
        %v432 = vunpack.c.l.b16 %v383
        %v433 = vunpack.c.h.b16 %v383
        %v434 = vunpack.c.l.b16 %v384
        %v435 = vunpack.c.h.b16 %v384
        %v436 = vunpack.c.l.b16 %v385
        %v437 = vunpack.c.h.b16 %v385
        %v438 = vunpack.c.l.b16 %v386
        %v439 = vunpack.c.h.b16 %v386
        %v440 = vunpack.c.l.b16 %v387
        %v441 = vunpack.c.h.b16 %v387
        %v442 = vunpack.c.l.b16 %v388
        %v443 = vunpack.c.h.b16 %v388
        %v444 = vunpack.c.l.b16 %v389
        %v445 = vunpack.c.h.b16 %v389
        %v446 = vunpack.c.l.b16 %v390
        %v447 = vunpack.c.h.b16 %v390
        %v448 = vunpack.c.l.b16 %v391
        %v449 = vunpack.c.h.b16 %v391
        %v450 = vunpack.c.l.b16 %v392
        %v451 = vunpack.c.h.b16 %v392
        %v452 = vunpack.c.l.b16 %v393
        %v453 = vunpack.c.h.b16 %v393
        %v454 = vpack.c.b16 %v424, %v422
        %v455 = vpack.c.b16 %v425, %v423
        %v456 = vpack.c.b16 %v428, %v426
        %v457 = vpack.c.b16 %v429, %v427
        %v458 = vpack.c.b16 %v432, %v430
        %v459 = vpack.c.b16 %v433, %v431
        %v460 = vpack.c.b16 %v436, %v434
        %v461 = vpack.c.b16 %v437, %v435
        %v462 = vpack.c.b16 %v440, %v438
        %v463 = vpack.c.b16 %v441, %v439
        %v464 = vpack.c.b16 %v444, %v442
        %v465 = vpack.c.b16 %v445, %v443
        %v466 = vpack.c.b16 %v448, %v446
        %v467 = vpack.c.b16 %v449, %v447
        %v468 = vpack.c.b16 %v452, %v450
        %v469 = vpack.c.b16 %v453, %v451
        %486 = vmatprep.subr.bf16.mxu0 %v469
        %487 = vmatpush1.bf16.msra.mxu0 %v468
        %488 = vmatprep.subr.bf16.mxu0 %v467
        %489 = vmatpush1.bf16.msra.mxu0 %v466
        %490 = vmatprep.subr.bf16.mxu0 %v465
        %491 = vmatpush1.bf16.msra.mxu0 %v464
        %492 = vmatprep.subr.bf16.mxu0 %v463
        %493 = vmatpush1.bf16.msra.mxu0 %v462
        %494 = vmatprep.subr.bf16.mxu0 %v461
        %495 = vmatpush1.bf16.msra.mxu0 %v460
        %496 = vmatprep.subr.bf16.mxu0 %v459
        %497 = vmatpush1.bf16.msra.mxu0 %v458
        %498 = vmatprep.subr.bf16.mxu0 %v457
        %499 = vmatpush1.bf16.msra.mxu0 %v456
        %500 = vmatprep.subr.bf16.mxu0 %v455
        %501 = vmatpush1.bf16.msra.mxu0 %v454
        %502 = vmatprep.subr.bf16.mxu0 0
        %503 = vmatpush2.bf16.msra.mxu0 0
        %504 = vmatprep.subr.bf16.mxu0 0
        %505 = vmatpush2.bf16.msra.mxu0 0
        %506 = vmatprep.subr.bf16.mxu0 0
        %507 = vmatpush2.bf16.msra.mxu0 0
        %508 = vmatprep.subr.bf16.mxu0 0
        %509 = vmatpush2.bf16.msra.mxu0 0
        %510 = vmatprep.subr.bf16.mxu0 0
        %511 = vmatpush2.bf16.msra.mxu0 0
        %512 = vmatprep.subr.bf16.mxu0 0
        %513 = vmatpush2.bf16.msra.mxu0 0
        %514 = vmatprep.subr.bf16.mxu0 0
        %515 = vmatpush2.bf16.msra.mxu0 0
        %516 = vmatprep.subr.bf16.mxu0 0
        %517 = vmatpush2.bf16.msra.mxu0 0
        %518 = vmatprep.mubr.bf16.mxu0 0
        %519 = vmatmul.mubr.bf16.gmra.mxu0 %v377
        %v520 = vpop.f32.mrf.mxu0
        %v521 = vadd.f32 %v399, %v520
        %v522 = vpop.f32.mrf.mxu0
        %v523 = vadd.f32 %v403, %v522
        %v524 = vpop.f32.mrf.mxu0
        %v525 = vpop.f32.mrf.mxu0
        %526 = vdwg.mxu0
        %v527 = vmul.f32 %v521, 0.5
        %v528 = vmul.f32 %v523, 0.5
        %v529 = vmul.f32 %v521, 0.044715
        %v530 = vmul.f32 %v523, 0.044715
        %v531 = vmul.f32 %v529, %v521
        %v532 = vmul.f32 %v530, %v523
        %v533 = vmul.f32 %v531, %v521
        %v534 = vmul.f32 %v532, %v523
        %v535 = vadd.f32 %v521, %v533
        %v536 = vadd.f32 %v523, %v534
        %v537 = vmul.f32 %v535, 0.7978846
        %v538 = vmul.f32 %v536, 0.7978846
        %v539 = vtanh.pop %v537
        %v540 = vtanh.pop %v538
        %v541 = vadd.f32 %v539, 1.0
        %v542 = vadd.f32 %v540, 1.0
        %v543 = vmul.f32 %v527, %v541
        %v544 = vmul.f32 %v528, %v542
        %v545 = vld [vmem:[#allocation2] sm:$0xff]
        %v546 = vpack.c.bf16 %v543, %v543
        %v547 = vpack.c.bf16 %v544, %v544
        %v548 = vld [vmem:[%s325] sm:$0xf]
        %v549 = vld [vmem:[%s325 + $0x4] sm:$0xf]
        %v550 = vld [vmem:[%s325 + $0x8] sm:$0xf]
        %v551 = vld [vmem:[%s325 + $0xc] sm:$0xf]
        %v552 = vld [vmem:[%s325 + $0x10] sm:$0xf]
        %v553 = vld [vmem:[%s325 + $0x14] sm:$0xf]
        %v554 = vld [vmem:[%s325 + $0x18] sm:$0xf]
        %v555 = vld [vmem:[%s325 + $0x1c] sm:$0xf]
        %v556 = vld [vmem:[%s325 + $0x20] sm:$0xf]
        %v557 = vld [vmem:[%s325 + $0x24] sm:$0xf]
        %v558 = vld [vmem:[%s325 + $0x28] sm:$0xf]
        %v559 = vld [vmem:[%s325 + $0x2c] sm:$0xf]
        %v560 = vld [vmem:[%s325 + $0x30] sm:$0xf]
        %v561 = vld [vmem:[%s325 + $0x34] sm:$0xf]
        %v562 = vld [vmem:[%s325 + $0x38] sm:$0xf]
        %v563 = vld [vmem:[%s325 + $0x3c] sm:$0xf]
        %v564 = vld [vmem:[%s325 + $0x40] sm:$0xf]
        %v565 = vld [vmem:[%s325 + $0x44] sm:$0xf]
        %v566 = vld [vmem:[%s325 + $0x48] sm:$0xf]
        %v567 = vld [vmem:[%s325 + $0x4c] sm:$0xf]
        %v568 = vld [vmem:[%s325 + $0x50] sm:$0xf]
        %v569 = vld [vmem:[%s325 + $0x54] sm:$0xf]
        %v570 = vld [vmem:[%s325 + $0x58] sm:$0xf]
        %v571 = vld [vmem:[%s325 + $0x5c] sm:$0xf]
        %v572 = vld [vmem:[%s325 + $0x60] sm:$0xf]
        %v573 = vld [vmem:[%s325 + $0x64] sm:$0xf]
        %v574 = vld [vmem:[%s325 + $0x68] sm:$0xf]
        %v575 = vld [vmem:[%s325 + $0x6c] sm:$0xf]
        %v576 = vld [vmem:[%s325 + $0x70] sm:$0xf]
        %v577 = vld [vmem:[%s325 + $0x74] sm:$0xf]
        %v578 = vld [vmem:[%s325 + $0x78] sm:$0xf]
        %v579 = vld [vmem:[%s325 + $0x7c] sm:$0xf]
        %v612 = vunpack.c.l.b16 %v548
        %v613 = vunpack.c.l.b16 %v549
        %v614 = vunpack.c.l.b16 %v550
        %v615 = vunpack.c.l.b16 %v551
        %v616 = vunpack.c.l.b16 %v552
        %v617 = vunpack.c.l.b16 %v553
        %v618 = vunpack.c.l.b16 %v554
        %v619 = vunpack.c.l.b16 %v555
        %v620 = vunpack.c.l.b16 %v556
        %v621 = vunpack.c.l.b16 %v557
        %v622 = vunpack.c.l.b16 %v558
        %v623 = vunpack.c.l.b16 %v559
        %v624 = vunpack.c.l.b16 %v560
        %v625 = vunpack.c.l.b16 %v561
        %v626 = vunpack.c.l.b16 %v562
        %v627 = vunpack.c.l.b16 %v563
        %v628 = vunpack.c.l.b16 %v564
        %v629 = vunpack.c.l.b16 %v565
        %v630 = vunpack.c.l.b16 %v566
        %v631 = vunpack.c.l.b16 %v567
        %v632 = vunpack.c.l.b16 %v568
        %v633 = vunpack.c.l.b16 %v569
        %v634 = vunpack.c.l.b16 %v570
        %v635 = vunpack.c.l.b16 %v571
        %v636 = vunpack.c.l.b16 %v572
        %v637 = vunpack.c.l.b16 %v573
        %v638 = vunpack.c.l.b16 %v574
        %v639 = vunpack.c.l.b16 %v575
        %v640 = vunpack.c.l.b16 %v576
        %v641 = vunpack.c.l.b16 %v577
        %v642 = vunpack.c.l.b16 %v578
        %v643 = vunpack.c.l.b16 %v579
        %v644 = vpack.c.b16 %v613, %v612
        %v645 = vpack.c.b16 %v615, %v614
        %v646 = vpack.c.b16 %v617, %v616
        %v647 = vpack.c.b16 %v619, %v618
        %v648 = vpack.c.b16 %v621, %v620
        %v649 = vpack.c.b16 %v623, %v622
        %v650 = vpack.c.b16 %v625, %v624
        %v651 = vpack.c.b16 %v627, %v626
        %v652 = vpack.c.b16 %v629, %v628
        %v653 = vpack.c.b16 %v631, %v630
        %v654 = vpack.c.b16 %v633, %v632
        %v655 = vpack.c.b16 %v635, %v634
        %v656 = vpack.c.b16 %v637, %v636
        %v657 = vpack.c.b16 %v639, %v638
        %v658 = vpack.c.b16 %v641, %v640
        %v659 = vpack.c.b16 %v643, %v642
        %676 = vmatprep.subr.bf16.mxu0 0
        %677 = vmatpush1.bf16.msra.mxu0 %v651
        %678 = vmatprep.subr.bf16.mxu0 0
        %679 = vmatpush1.bf16.msra.mxu0 %v650
        %680 = vmatprep.subr.bf16.mxu0 0
        %681 = vmatpush1.bf16.msra.mxu0 %v649
        %682 = vmatprep.subr.bf16.mxu0 0
        %683 = vmatpush1.bf16.msra.mxu0 %v648
        %684 = vmatprep.subr.bf16.mxu0 0
        %685 = vmatpush1.bf16.msra.mxu0 %v647
        %686 = vmatprep.subr.bf16.mxu0 0
        %687 = vmatpush1.bf16.msra.mxu0 %v646
        %688 = vmatprep.subr.bf16.mxu0 0
        %689 = vmatpush1.bf16.msra.mxu0 %v645
        %690 = vmatprep.subr.bf16.mxu0 0
        %691 = vmatpush1.bf16.msra.mxu0 %v644
        %692 = vmatprep.subr.bf16.mxu0 0
        %693 = vmatpush2.bf16.msra.mxu0 %v659
        %694 = vmatprep.subr.bf16.mxu0 0
        %695 = vmatpush2.bf16.msra.mxu0 %v658
        %696 = vmatprep.subr.bf16.mxu0 0
        %697 = vmatpush2.bf16.msra.mxu0 %v657
        %698 = vmatprep.subr.bf16.mxu0 0
        %699 = vmatpush2.bf16.msra.mxu0 %v656
        %700 = vmatprep.subr.bf16.mxu0 0
        %701 = vmatpush2.bf16.msra.mxu0 %v655
        %702 = vmatprep.subr.bf16.mxu0 0
        %703 = vmatpush2.bf16.msra.mxu0 %v654
        %704 = vmatprep.subr.bf16.mxu0 0
        %705 = vmatpush2.bf16.msra.mxu0 %v653
        %706 = vmatprep.subr.bf16.mxu0 0
        %707 = vmatpush2.bf16.msra.mxu0 %v652
        %708 = vmatprep.mubr.bf16.mxu0 %v547
        %709 = vmatmul.mubr.bf16.gmra.mxu0 %v546
        %v710 = vpop.f32.mrf.mxu0
        %v711 = vadd.f32 0.0, %v710
        %v712 = vpop.f32.mrf.mxu0
        %v713 = vpop.f32.mrf.mxu0
        %v714 = vpop.f32.mrf.mxu0
        %715 = vdwg.mxu0
        %v716 = vadd.f32 %v545, %v711
        %717 = vst [vmem:[#allocation2] sm:$0xff] %v716
        %p718 = scmp.eq.s32.totalorder %s33, 1
        // Predicated region
        $region61: #{tpu_custom_call.1} parent=39 // pred_check
          %p719 = pneg %p718
        $region62: #{tpu_custom_call.1} parent=39 // pred_check_branch
          %721 = sbr.rel (%p719) target = $region64
        $region63: #{tpu_custom_call.1} parent=39 // pred_region
          %v722 = vld [vmem:[#allocation2] sm:$0xff]
          %v723 = vld [vmem:[%s4] sm:$0x1]
          %v725 = vlaneseq
          %v726 = vshrl.u32 %v725, 7
          %v727 = vsub.s32 0, %v726
          %v728 = vrot.slane %v723, %v727
          %v730 = vadd.f32 %v722, %v728
          %731 = vst [vmem:[%s366] sm:$0xff] %v730
        $region64: #{tpu_custom_call.1} parent=39 // pred_fallthru
          _
        %s732 = sand.u32 %s173, 1
        %s733 = scalar_lea.sflag [#allocation5], %s732
        %s734 = sand.u32 %s173, 1
        %s735 = smul.addr %s734, 8
        %s736 = scalar_lea.vmem [#allocation11], %s735
        // Predicated region
        $region65: #{tpu_custom_call.1} parent=39 // pred_check
          %p737 = pneg %p183
        $region66: #{tpu_custom_call.1} parent=39 // pred_check_branch
          %739 = sbr.rel (%p737) target = $region68
        $region67: #{tpu_custom_call.1} parent=39 // pred_region
          %s741 = ssub.s32 128, 128
          %742 = vsyncadd %s733, %s741
          %s743 = smul.addr %s32, 128
          %s744 = scalar_lea.hbm %s5, %s743
          %s746 = sshll.u32 %s736, 4
          %s747 = int_to_ptr.vmem [resolvable:$true] %s746
          %749 = dma.vmem_to_hbm [thread:$0]  %s747, 128, %s744, %s733
        $region68: #{tpu_custom_call.1} parent=39 // pred_fallthru
          _
      $region40: #{tpu_custom_call.1} parent=5 // pred_fallthru
        _
      %p750 = scmp.le.s32.totalorder 2, %s23
      // Predicated region
      $region69: #{tpu_custom_call.1} parent=5 // pred_check
        %p751 = pneg %p750
      $region70: #{tpu_custom_call.1} parent=5 // pred_check_branch
        %753 = sbr.rel (%p751) target = $region72
      $region71: #{tpu_custom_call.1} parent=5 // pred_region
        %s754 = ssub.s32 %s23, 2
        // Predicated region
        $region73: #{tpu_custom_call.1} parent=71 // pred_check
          %p755 = pneg %p189
        $region74: #{tpu_custom_call.1} parent=71 // pred_check_branch
          %757 = sbr.rel (%p755) target = $region76
        $region75: #{tpu_custom_call.1} parent=71 // pred_region
          %s758 = sand.u32 %s174, 1
          %s759 = scalar_lea.sflag [#allocation5], %s758
          %s760 = sand.u32 %s174, 1
          %s761 = smul.addr %s760, 8
          %s762 = scalar_lea.vmem [#allocation11], %s761
          %763 = dma.done %s759, 128
        $region76: #{tpu_custom_call.1} parent=71 // pred_fallthru
          _
      $region72: #{tpu_custom_call.1} parent=5 // pred_fallthru
        _
    $region6: #{tpu_custom_call.1} parent=1 // loop_footer
      %s27 = sadd.s32 1, %s23
    $region7: #{tpu_custom_call.1} parent=1 // loop_footer_branch
      %22 = sbr.rel target = $region3
    $region8: #{tpu_custom_call.1} parent=1 // loop_exit
      _
    %764 = vsyncpa [#allocation4], 1
    %s765 = scalar_lea.sflag [#allocation4], 1
    %766 = vsyncpa %s765, 1
    %767 = vsyncpa [#allocation7], 1
    %s768 = scalar_lea.sflag [#allocation7], 1
    %769 = vsyncpa %s768, 1
    %770 = vsyncpa [#allocation10], 1
    %s771 = scalar_lea.sflag [#allocation10], 1
    %772 = vsyncpa %s771, 1
    %773 = vsyncpa [#allocation5], 1
    %s774 = scalar_lea.sflag [#allocation5], 1
    %775 = vsyncpa %s774, 1

</llo_original>
